<compile_context>
chip_gen: v6e
topology: v6e:2x2x1
jax: 0.10.0
libtpu: 0.0.40
codegen_flags: <defaults>
</compile_context>

<pallas_src>
import functools

import jax
import jax.numpy as jnp
from jax.experimental import pallas as pl
from jax.experimental.pallas import tpu as pltpu


def basic_block_kernel(x_ref, w1_ref, w2_ref, b1_ref, b2s_ref, out_ref, *,
                       proj, fuse1, fuse2):
    # x_ref  : (B, H, W*Cin)  bf16 channel-packed block of B samples
    # w1_ref : conv1 (+fused shortcut) banded taps, bf16
    #          fused-K : (3*W*Cin, n1)   else (3, W*Cin, n1)
    #          n1 = 2*W*Cout if proj else W*Cout
    # w2_ref : conv2 banded taps, bf16: (3*W*Cout, W*Cout) or (3, W*Cout, W*Cout)
    # b1_ref : (1, W*Cout) f32 folded bn1 shift
    # b2s_ref: (1, W*Cout) f32 folded bn2 (+ shortcut-bn) shift
    # out_ref: (B, H, W*Cout) f32 lane-dense
    B, H, WCin = x_ref.shape
    WCout = out_ref.shape[2]
    M = B * H

    def conv3x3_rows(x3, w_ref, fuse):
        # x3: (B, H, K) bf16.  out[b, h] = x3[b,h-1]@T0 + x3[b,h]@T1 + x3[b,h+1]@T2
        # with a zero H halo per sample (boundaries handled structurally on the
        # 3-D view, so batched samples never bleed into each other).
        Bx, Hx, K = x3.shape
        z = jnp.zeros((Bx, 1, K), x3.dtype)
        x_up = jnp.concatenate([z, x3[:, :Hx - 1]], axis=1)   # row h-1
        x_dn = jnp.concatenate([x3[:, 1:], z], axis=1)        # row h+1
        if fuse:
            # Tile-aligned lane concat (K multiple of 128): one matmul per conv.
            xc = jnp.concatenate([x_up, x3, x_dn], axis=-1).reshape(Bx * Hx, 3 * K)
            return jnp.dot(xc, w_ref[...], preferred_element_type=jnp.float32)
        # Fallback: single chained accumulator (MRB-accumulate friendly on v7x).
        acc = jnp.dot(x_up.reshape(Bx * Hx, K), w_ref[0],
                      preferred_element_type=jnp.float32)
        acc = acc + jnp.dot(x3.reshape(Bx * Hx, K), w_ref[1],
                            preferred_element_type=jnp.float32)
        acc = acc + jnp.dot(x_dn.reshape(Bx * Hx, K), w_ref[2],
                            preferred_element_type=jnp.float32)
        return acc

    x3 = x_ref[...]                                    # (B, H, W*Cin) bf16

    # conv1 (+ fused projection shortcut) ------------------------------------
    acc1 = conv3x3_rows(x3, w1_ref, fuse1)             # (M, WCout) or (M, 2*WCout)
    if proj:
        h1_pre = acc1[:, :WCout]                       # aligned lane slice @128
        sc = acc1[:, WCout:]                           # 1x1-conv + BN shortcut
    else:
        h1_pre = acc1
        sc = x3.reshape(M, WCin).astype(jnp.float32)   # identity shortcut

    h1 = jnp.maximum(h1_pre + b1_ref[...], 0.0).astype(jnp.bfloat16)

    # conv2 + combined (bn2 + shortcut-bn) shift + residual + ReLU -----------
    h2 = conv3x3_rows(h1.reshape(B, H, WCout), w2_ref, fuse2)
    out = jnp.maximum(h2 + sc + b2s_ref[...], 0.0)
    out_ref[...] = out.reshape(B, H, WCout)


def _fold_bn(gamma, beta, mean, var, eps=1e-5):
    s = gamma / jnp.sqrt(var + eps)
    return s.astype(jnp.float32), (beta - mean * s).astype(jnp.float32)


def _banded_tap_mats(w_oihw, width):
    """(Cout, Cin, 3, 3) -> (3, width*Cin, width*Cout) banded row-tap operands.

    mats[dh][wi*Cin + ci, wo*Cout + co] = w[co, ci, dh, wi - wo + 1] inside the
    band (0 outside), so one whole kernel row (all kw taps + the W padding) is a
    single matmul against a channel-packed image row.
    """
    tap = jnp.transpose(w_oihw, (2, 3, 1, 0)).astype(jnp.float32)  # (kh,kw,Cin,Cout)
    c_in, c_out = tap.shape[2], tap.shape[3]
    mats = []
    for dh in range(3):
        t = jnp.zeros((width * c_in, width * c_out), jnp.float32)
        for dw in range(3):
            t = t + jnp.kron(jnp.eye(width, k=-(dw - 1), dtype=jnp.float32),
                             tap[dh, dw])
        mats.append(t)
    return jnp.stack(mats)


def _pick_block_batch(n, h, m_target=256):
    """Largest divisor B of n with B*h <= m_target (fill the MXU M dimension)."""
    best = 1
    for b in range(1, n + 1):
        if n % b == 0 and b * h <= m_target:
            best = b
    return best


@jax.jit
def basic_block_pallas(x_nchw, params):
    """x_nchw: (N, Cin, H, W) float32.  Returns (N, Cout, H, W) float32."""
    N, Cin, H, W = x_nchw.shape
    Cout = params["w1"].shape[0]
    proj = "ws" in params                       # projection shortcut needed?
    WCin, WCout = W * Cin, W * Cout
    B = _pick_block_batch(N, H)                 # samples per grid step (M = B*H)
    # TODO(synk): for large N also keep >=4-8 grid steps per TensorCore.

    s1, b1 = _fold_bn(*params["bn1"])
    s2, b2 = _fold_bn(*params["bn2"])
    band1 = _banded_tap_mats(params["w1"] * s1[:, None, None, None], W)
    band2 = _banded_tap_mats(params["w2"] * s2[:, None, None, None], W)

    if proj:
        ss, bs = _fold_bn(*params["bns"])
        ws_fold = (params["ws"][:, :, 0, 0] * ss[:, None]).T         # (Cin, Cout)
        ws_band = jnp.kron(jnp.eye(W, dtype=jnp.float32), ws_fold)   # (WCin, WCout)
        zpad = jnp.zeros_like(ws_band)
        # Output-axis fusion: cols [0:WCout] = conv1, cols [WCout:] = shortcut
        # (only the center tap carries the 1x1 shortcut weight).
        w1_ops = jnp.stack([jnp.concatenate([band1[0], zpad], axis=1),
                            jnp.concatenate([band1[1], ws_band], axis=1),
                            jnp.concatenate([band1[2], zpad], axis=1)])
        b2s = b2 + bs
    else:
        w1_ops = band1
        b2s = b2

    # K-fuse the 3 taps into one matmul when the shifted-input lane concat is
    # tile-aligned (input lane width multiple of 128).
    fuse1 = WCin % 128 == 0
    fuse2 = WCout % 128 == 0
    w1_in = (w1_ops.reshape(3 * WCin, -1) if fuse1 else w1_ops).astype(jnp.bfloat16)
    w2_in = (band2.reshape(3 * WCout, WCout) if fuse2 else band2).astype(jnp.bfloat16)

    # BN shifts tiled over W -> lane-dense (1, W*Cout) biases.
    b1t = jnp.tile(b1, (W,))[None, :]
    b2st = jnp.tile(b2s, (W,))[None, :]

    # Channel-packed bf16 activations (one fused transpose+reshape+cast).
    x_packed = jnp.transpose(x_nchw, (0, 2, 3, 1)).reshape(N, H, WCin
                                                           ).astype(jnp.bfloat16)

    def const_spec(shape):
        nd = len(shape)
        return pl.BlockSpec(shape, lambda n, _nd=nd: (0,) * _nd)

    kernel = functools.partial(basic_block_kernel, proj=proj,
                               fuse1=fuse1, fuse2=fuse2)

    out = pl.pallas_call(
        kernel,
        out_shape=jax.ShapeDtypeStruct((N, H, WCout), jnp.float32),
        grid_spec=pltpu.PrefetchScalarGridSpec(
            num_scalar_prefetch=0,
            grid=(N // B,),
            in_specs=[
                pl.BlockSpec((B, H, WCin), lambda n: (n, 0, 0)),
                const_spec(w1_in.shape),
                const_spec(w2_in.shape),
                const_spec((1, WCout)),
                const_spec((1, WCout)),
            ],
            out_specs=pl.BlockSpec((B, H, WCout), lambda n: (n, 0, 0)),
        ),
        compiler_params=pltpu.CompilerParams(
            dimension_semantics=("parallel",)),
    )(x_packed, w1_in, w2_in, b1t, b2st)

    # TODO(synk): in a chained-block network keep the packed layout and skip
    #             this NCHW round-trip.
    return jnp.transpose(out.reshape(N, H, W, Cout), (0, 3, 1, 2))


def basic_block_reference(x_nchw, params):
    """Pure-JAX reference with the same folded-BN / bf16-operand numerics."""
    x = jnp.transpose(x_nchw, (0, 2, 3, 1)).astype(jnp.float32)
    proj = "ws" in params

    s1, b1 = _fold_bn(*params["bn1"])
    s2, b2 = _fold_bn(*params["bn2"])
    w1f = (params["w1"] * s1[:, None, None, None]).astype(jnp.bfloat16)
    w2f = (params["w2"] * s2[:, None, None, None]).astype(jnp.bfloat16)

    def conv(inp, w_oihw):
        w_hwio = jnp.transpose(w_oihw, (2, 3, 1, 0))
        return jax.lax.conv_general_dilated(
            inp.astype(jnp.bfloat16), w_hwio, (1, 1), "SAME",
            dimension_numbers=("NHWC", "HWIO", "NHWC"),
            preferred_element_type=jnp.float32)

    h1 = jnp.maximum(conv(x, w1f) + b1, 0.0)
    h2 = conv(h1, w2f) + b2
    if proj:
        ss, bs = _fold_bn(*params["bns"])
        wsf = (params["ws"] * ss[:, None, None, None]).astype(jnp.bfloat16)
        sc = conv(x, wsf) + bs
    else:
        # Identity shortcut; bf16 round-trip matches the kernel's packed input.
        sc = x.astype(jnp.bfloat16).astype(jnp.float32)
    out = jnp.maximum(h2 + sc, 0.0)
    return jnp.transpose(out, (0, 3, 1, 2))


def make_params(key, in_planes, planes):
    ks = jax.random.split(key, 6)

    def bn(k, c):
        kg, kb = jax.random.split(k)
        gamma = 1.0 + 0.1 * jax.random.normal(kg, (c,), jnp.float32)
        beta = 0.1 * jax.random.normal(kb, (c,), jnp.float32)
        mean = jnp.zeros((c,), jnp.float32)
        var = jnp.ones((c,), jnp.float32)
        return (gamma, beta, mean, var)

    params = {
        "w1": 0.1 * jax.random.normal(ks[0], (planes, in_planes, 3, 3), jnp.float32),
        "w2": 0.1 * jax.random.normal(ks[1], (planes, planes, 3, 3), jnp.float32),
        "bn1": bn(ks[3], planes),
        "bn2": bn(ks[4], planes),
    }
    if in_planes != planes:     # stride=1: projection shortcut only if planes change
        params["ws"] = 0.1 * jax.random.normal(
            ks[2], (planes, in_planes, 1, 1), jnp.float32)
        params["bns"] = bn(ks[5], planes)
    return params


if __name__ == "__main__":
    key = jax.random.PRNGKey(0)
    k1, k2, k3, k4 = jax.random.split(key, 4)
    H = W = 16
    planes = 8

    # Test 1: projection shortcut (in_planes != planes), small batch.
    N1, Cin1 = 2, 4
    x1 = jax.random.normal(k1, (N1, Cin1, H, W), jnp.float32)
    p1 = make_params(k2, Cin1, planes)
    out1 = jax.block_until_ready(basic_block_pallas(x1, p1))
    ref1 = basic_block_reference(x1, p1)
    assert out1.shape == (N1, planes, H, W)
    err1 = float(jnp.max(jnp.abs(out1 - ref1)))
    assert jnp.allclose(out1, ref1, rtol=1e-2, atol=2e-2), f"proj max err {err1}"

    # Test 2: identity shortcut (in_planes == planes), batched-M path
    # (B=16 samples per block -> M=256, grid of 2 steps) with K-fused convs.
    N2, Cin2 = 32, 8
    x2 = jax.random.normal(k3, (N2, Cin2, H, W), jnp.float32)
    p2 = make_params(k4, Cin2, planes)
    out2 = jax.block_until_ready(basic_block_pallas(x2, p2))
    ref2 = basic_block_reference(x2, p2)
    assert out2.shape == (N2, planes, H, W)
    err2 = float(jnp.max(jnp.abs(out2 - ref2)))
    assert jnp.allclose(out2, ref2, rtol=1e-2, atol=2e-2), f"identity max err {err2}"

    print("KERNEL_OK")
</pallas_src>

<mosaic_0001>
module attributes {stable_mosaic.version = 11 : i64} {
  func.func @basic_block_kernel(%arg0: i32, %arg1: memref<2x16x64xbf16, #tpu.memory_space<vmem>>, %arg2: memref<3x64x256xbf16, #tpu.memory_space<vmem>>, %arg3: memref<384x128xbf16, #tpu.memory_space<vmem>>, %arg4: memref<1x128xf32, #tpu.memory_space<vmem>>, %arg5: memref<1x128xf32, #tpu.memory_space<vmem>>, %arg6: memref<2x16x128xf32, #tpu.memory_space<vmem>>) attributes {dimension_semantics = [#tpu.dimension_semantics<parallel>], iteration_bounds = array<i64: 1>, scalar_prefetch = 0 : i64, scratch_operands = 0 : i64, tpu.core_type = #tpu.core_type<tc>, window_params = [{transform_indices = @transform_0, window_bounds = array<i64: 2, 16, 64>}, {pipeline_mode = #tpu.pipeline_mode<synchronous>, transform_indices = @transform_1, window_bounds = array<i64: 3, 64, 256>}, {pipeline_mode = #tpu.pipeline_mode<synchronous>, transform_indices = @transform_2, window_bounds = array<i64: 384, 128>}, {pipeline_mode = #tpu.pipeline_mode<synchronous>, transform_indices = @transform_3, window_bounds = array<i64: 1, 128>}, {pipeline_mode = #tpu.pipeline_mode<synchronous>, transform_indices = @transform_4, window_bounds = array<i64: 1, 128>}, {transform_indices = @transform_5, window_bounds = array<i64: 2, 16, 128>}]} {
    %c0 = arith.constant 0 : index
    %c0_0 = arith.constant 0 : index
    %c0_1 = arith.constant 0 : index
    %0 = vector.load %arg1[%c0, %c0_0, %c0_1] : memref<2x16x64xbf16, #tpu.memory_space<vmem>>, vector<2x16x64xbf16>
    %cst = arith.constant 0.000000e+00 : bf16
    %1 = vector.broadcast %cst : bf16 to vector<2x1x64xbf16>
    %2 = vector.extract_strided_slice %0 {offsets = [0, 0, 0], sizes = [2, 15, 64], strides = [1, 1, 1]} : vector<2x16x64xbf16> to vector<2x15x64xbf16>
    %3 = tpu.concatenate %1, %2 in 1 : vector<2x1x64xbf16>, vector<2x15x64xbf16> -> vector<2x16x64xbf16>
    %4 = vector.extract_strided_slice %0 {offsets = [0, 1, 0], sizes = [2, 15, 64], strides = [1, 1, 1]} : vector<2x16x64xbf16> to vector<2x15x64xbf16>
    %5 = tpu.concatenate %4, %1 in 1 : vector<2x15x64xbf16>, vector<2x1x64xbf16> -> vector<2x16x64xbf16>
    %6 = vector.shape_cast %3 : vector<2x16x64xbf16> to vector<32x64xbf16>
    %c0_2 = arith.constant 0 : index
    %c0_3 = arith.constant 0 : index
    %c0_4 = arith.constant 0 : index
    %7 = vector.load %arg2[%c0_2, %c0_3, %c0_4] : memref<3x64x256xbf16, #tpu.memory_space<vmem>>, vector<1x64x256xbf16>
    %8 = vector.shape_cast %7 : vector<1x64x256xbf16> to vector<64x256xbf16>
    %cst_5 = arith.constant dense<0.000000e+00> : vector<32x256xf32>
    %9 = tpu.matmul %6, %8, %cst_5 {dimension_numbers = #tpu.dot_dimension_numbers<[1], [0], [0], [1], [0, 0, 1, 1], [], []>} : vector<32x64xbf16>, vector<64x256xbf16>, vector<32x256xf32> -> vector<32x256xf32>
    %10 = vector.shape_cast %0 : vector<2x16x64xbf16> to vector<32x64xbf16>
    %c1 = arith.constant 1 : index
    %c0_6 = arith.constant 0 : index
    %c0_7 = arith.constant 0 : index
    %11 = vector.load %arg2[%c1, %c0_6, %c0_7] : memref<3x64x256xbf16, #tpu.memory_space<vmem>>, vector<1x64x256xbf16>
    %12 = vector.shape_cast %11 : vector<1x64x256xbf16> to vector<64x256xbf16>
    %cst_8 = arith.constant dense<0.000000e+00> : vector<32x256xf32>
    %13 = tpu.matmul %10, %12, %cst_8 {dimension_numbers = #tpu.dot_dimension_numbers<[1], [0], [0], [1], [0, 0, 1, 1], [], []>} : vector<32x64xbf16>, vector<64x256xbf16>, vector<32x256xf32> -> vector<32x256xf32>
    %14 = arith.addf %9, %13 : vector<32x256xf32>
    %15 = vector.shape_cast %5 : vector<2x16x64xbf16> to vector<32x64xbf16>
    %c2 = arith.constant 2 : index
    %c0_9 = arith.constant 0 : index
    %c0_10 = arith.constant 0 : index
    %16 = vector.load %arg2[%c2, %c0_9, %c0_10] : memref<3x64x256xbf16, #tpu.memory_space<vmem>>, vector<1x64x256xbf16>
    %17 = vector.shape_cast %16 : vector<1x64x256xbf16> to vector<64x256xbf16>
    %cst_11 = arith.constant dense<0.000000e+00> : vector<32x256xf32>
    %18 = tpu.matmul %15, %17, %cst_11 {dimension_numbers = #tpu.dot_dimension_numbers<[1], [0], [0], [1], [0, 0, 1, 1], [], []>} : vector<32x64xbf16>, vector<64x256xbf16>, vector<32x256xf32> -> vector<32x256xf32>
    %19 = arith.addf %14, %18 : vector<32x256xf32>
    %20 = vector.extract_strided_slice %19 {offsets = [0, 0], sizes = [32, 128], strides = [1, 1]} : vector<32x256xf32> to vector<32x128xf32>
    %21 = vector.extract_strided_slice %19 {offsets = [0, 128], sizes = [32, 128], strides = [1, 1]} : vector<32x256xf32> to vector<32x128xf32>
    %c0_12 = arith.constant 0 : index
    %c0_13 = arith.constant 0 : index
    %22 = vector.load %arg4[%c0_12, %c0_13] : memref<1x128xf32, #tpu.memory_space<vmem>>, vector<1x128xf32>
    %23 = vector.broadcast %22 : vector<1x128xf32> to vector<32x128xf32>
    %24 = arith.addf %20, %23 : vector<32x128xf32>
    %cst_14 = arith.constant 0.000000e+00 : f32
    %25 = vector.broadcast %cst_14 : f32 to vector<32x128xf32>
    %26 = arith.maximumf %24, %25 : vector<32x128xf32>
    %27 = arith.truncf %26 : vector<32x128xf32> to vector<32x128xbf16>
    %28 = vector.shape_cast %27 : vector<32x128xbf16> to vector<2x16x128xbf16>
    %cst_15 = arith.constant 0.000000e+00 : bf16
    %29 = vector.broadcast %cst_15 : bf16 to vector<2x1x128xbf16>
    %30 = vector.extract_strided_slice %28 {offsets = [0, 0, 0], sizes = [2, 15, 128], strides = [1, 1, 1]} : vector<2x16x128xbf16> to vector<2x15x128xbf16>
    %31 = tpu.concatenate %29, %30 in 1 : vector<2x1x128xbf16>, vector<2x15x128xbf16> -> vector<2x16x128xbf16>
    %32 = vector.extract_strided_slice %28 {offsets = [0, 1, 0], sizes = [2, 15, 128], strides = [1, 1, 1]} : vector<2x16x128xbf16> to vector<2x15x128xbf16>
    %33 = tpu.concatenate %32, %29 in 1 : vector<2x15x128xbf16>, vector<2x1x128xbf16> -> vector<2x16x128xbf16>
    %34 = tpu.concatenate %31, %28, %33 in 2 : vector<2x16x128xbf16>, vector<2x16x128xbf16>, vector<2x16x128xbf16> -> vector<2x16x384xbf16>
    %35 = vector.shape_cast %34 : vector<2x16x384xbf16> to vector<32x384xbf16>
    %c0_16 = arith.constant 0 : index
    %c0_17 = arith.constant 0 : index
    %36 = vector.load %arg3[%c0_16, %c0_17] : memref<384x128xbf16, #tpu.memory_space<vmem>>, vector<384x128xbf16>
    %cst_18 = arith.constant dense<0.000000e+00> : vector<32x128xf32>
    %37 = tpu.matmul %35, %36, %cst_18 {dimension_numbers = #tpu.dot_dimension_numbers<[1], [0], [0], [1], [0, 0, 1, 1], [], []>} : vector<32x384xbf16>, vector<384x128xbf16>, vector<32x128xf32> -> vector<32x128xf32>
    %38 = arith.addf %37, %21 : vector<32x128xf32>
    %c0_19 = arith.constant 0 : index
    %c0_20 = arith.constant 0 : index
    %39 = vector.load %arg5[%c0_19, %c0_20] : memref<1x128xf32, #tpu.memory_space<vmem>>, vector<1x128xf32>
    %40 = vector.broadcast %39 : vector<1x128xf32> to vector<32x128xf32>
    %41 = arith.addf %38, %40 : vector<32x128xf32>
    %cst_21 = arith.constant 0.000000e+00 : f32
    %42 = vector.broadcast %cst_21 : f32 to vector<32x128xf32>
    %43 = arith.maximumf %41, %42 : vector<32x128xf32>
    %44 = vector.shape_cast %43 : vector<32x128xf32> to vector<2x16x128xf32>
    %c0_22 = arith.constant 0 : index
    %c0_23 = arith.constant 0 : index
    %c0_24 = arith.constant 0 : index
    %45 = vector.load %arg6[%c0_22, %c0_23, %c0_24] : memref<2x16x128xf32, #tpu.memory_space<vmem>>, vector<2x16x128xf32>
    tpu.vector_store %arg6[%c0_22, %c0_23, %c0_24], %44 {strides = array<i32>} : memref<2x16x128xf32, #tpu.memory_space<vmem>>, vector<2x16x128xf32>,
    return
  }
  func.func @transform_0(%arg0: i32) -> (i32, i32, i32) {
    %c0_i32 = arith.constant 0 : i32
    %c0_i32_0 = arith.constant 0 : i32
    %c0_i32_1 = arith.constant 0 : i32
    return %arg0, %c0_i32, %c0_i32_0 : i32, i32, i32
  }
  func.func @transform_1(%arg0: i32) -> (i32, i32, i32) {
    %c0_i32 = arith.constant 0 : i32
    %c0_i32_0 = arith.constant 0 : i32
    %c0_i32_1 = arith.constant 0 : i32
    %c0_i32_2 = arith.constant 0 : i32
    return %c0_i32, %c0_i32_0, %c0_i32_1 : i32, i32, i32
  }
  func.func @transform_2(%arg0: i32) -> (i32, i32) {
    %c0_i32 = arith.constant 0 : i32
    %c0_i32_0 = arith.constant 0 : i32
    %c0_i32_1 = arith.constant 0 : i32
    return %c0_i32, %c0_i32_0 : i32, i32
  }
  func.func @transform_3(%arg0: i32) -> (i32, i32) {
    %c0_i32 = arith.constant 0 : i32
    %c0_i32_0 = arith.constant 0 : i32
    %c0_i32_1 = arith.constant 0 : i32
    return %c0_i32, %c0_i32_0 : i32, i32
  }
  func.func @transform_4(%arg0: i32) -> (i32, i32) {
    %c0_i32 = arith.constant 0 : i32
    %c0_i32_0 = arith.constant 0 : i32
    %c0_i32_1 = arith.constant 0 : i32
    return %c0_i32, %c0_i32_0 : i32, i32
  }
  func.func @transform_5(%arg0: i32) -> (i32, i32, i32) {
    %c0_i32 = arith.constant 0 : i32
    %c0_i32_0 = arith.constant 0 : i32
    %c0_i32_1 = arith.constant 0 : i32
    return %arg0, %c0_i32, %c0_i32_0 : i32, i32, i32
  }
}

</mosaic_0001>

<llo_original>
// kernel: tile.18
$region0: #{tile.18}
  #allocation0 [shape = 's32[1]{0}', space=sflag, size = 0x4, scoped, tag = 'scoped memory for tile.18']
  %s0 = inlined_call_operand.vmem [shape: f32[8], index: 0, kind: input, shape index: {}]
  %s1 = inlined_call_operand.vmem [shape: f32[16,8], index: 1, kind: output, shape index: {}]
  // Predicated region
  $region2: #{tile.18} parent=0 // pred_check
    _
  $region3: #{tile.18} parent=0 // pred_check_branch
    %3 = sbr.rel (0) target = $region5
  $region4: #{tile.18} parent=0 // pred_region
    _
  $region5: #{tile.18} parent=0 // pred_fallthru
    _
  %v4 = vld [vmem:[%s0] ss:$0 sm:$0xff]
  %5 = vst [vmem:[%s1] sm:$0xff] %v4
  %s6 = scalar_lea.vmem %s1, 8
  %7 = vst [vmem:[%s6] sm:$0xff] %v4

// kernel: tile.19
$region0: #{tile.19}
  %s0 = inlined_call_operand.vmem [shape: f32[16,8], index: 0, kind: input, shape index: {}]
  %s1 = inlined_call_operand.vmem [shape: f32[1,128], index: 1, kind: output, shape index: {}]
  $region1: #{tile.19} parent=0
    #allocation0 [shape = 'u8[4096]{0}', space=vmem, size = 0x1000, scoped, tag = 'scoped mem for output reshape']
    %v2 = vld [vmem:[%s0] sm:$0x1]
    %vm3 = vcmask 64512
    %4 = vst.msk [vmem:[#allocation0] sm:$0x1] %vm3, %v2
    %s5 = scalar_lea.vmem %s0, 15
    %v6 = vld [vmem:[%s5] sm:$0x1]
    %7 = vrot.lane.b32.xlu0 %v6, 120
    %v8 = vpop.permute.xlu0 %7
    %vm9 = vcmask 1048512
    %10 = vst.msk [vmem:[#allocation0] sm:$0x1] %vm9, %v8
    %s11 = scalar_lea.vmem %s0, 14
    %v12 = vld [vmem:[%s11] sm:$0x1]
    %13 = vrot.lane.b32.xlu0 %v12, 112
    %v14 = vpop.permute.xlu0 %13
    %vm15 = vcmask 982912
    %16 = vst.msk [vmem:[#allocation0] sm:$0x1] %vm15, %v14
    %s17 = scalar_lea.vmem %s0, 13
    %v18 = vld [vmem:[%s17] sm:$0x1]
    %19 = vrot.lane.b32.xlu0 %v18, 104
    %v20 = vpop.permute.xlu0 %19
    %vm21 = vcmask 917312
    %22 = vst.msk [vmem:[#allocation0] sm:$0x1] %vm21, %v20
    %s23 = scalar_lea.vmem %s0, 12
    %v24 = vld [vmem:[%s23] sm:$0x1]
    %25 = vrot.lane.b32.xlu0 %v24, 96
    %v26 = vpop.permute.xlu0 %25
    %vm27 = vcmask 851712
    %28 = vst.msk [vmem:[#allocation0] sm:$0x1] %vm27, %v26
    %s29 = scalar_lea.vmem %s0, 11
    %v30 = vld [vmem:[%s29] sm:$0x1]
    %31 = vrot.lane.b32.xlu0 %v30, 88
    %v32 = vpop.permute.xlu0 %31
    %vm33 = vcmask 786112
    %34 = vst.msk [vmem:[#allocation0] sm:$0x1] %vm33, %v32
    %s35 = scalar_lea.vmem %s0, 10
    %v36 = vld [vmem:[%s35] sm:$0x1]
    %37 = vrot.lane.b32.xlu0 %v36, 80
    %v38 = vpop.permute.xlu0 %37
    %vm39 = vcmask 720512
    %40 = vst.msk [vmem:[#allocation0] sm:$0x1] %vm39, %v38
    %s41 = scalar_lea.vmem %s0, 9
    %v42 = vld [vmem:[%s41] sm:$0x1]
    %43 = vrot.lane.b32.xlu0 %v42, 72
    %v44 = vpop.permute.xlu0 %43
    %vm45 = vcmask 654912
    %46 = vst.msk [vmem:[#allocation0] sm:$0x1] %vm45, %v44
    %s47 = scalar_lea.vmem %s0, 8
    %v48 = vld [vmem:[%s47] sm:$0x1]
    %49 = vrot.lane.b32.xlu0 %v48, 64
    %v50 = vpop.permute.xlu0 %49
    %vm51 = vcmask 589312
    %52 = vst.msk [vmem:[#allocation0] sm:$0x1] %vm51, %v50
    %s53 = scalar_lea.vmem %s0, 7
    %v54 = vld [vmem:[%s53] sm:$0x1]
    %55 = vrot.lane.b32.xlu0 %v54, 56
    %v56 = vpop.permute.xlu0 %55
    %vm57 = vcmask 523712
    %58 = vst.msk [vmem:[#allocation0] sm:$0x1] %vm57, %v56
    %s59 = scalar_lea.vmem %s0, 6
    %v60 = vld [vmem:[%s59] sm:$0x1]
    %61 = vrot.lane.b32.xlu0 %v60, 48
    %v62 = vpop.permute.xlu0 %61
    %vm63 = vcmask 458112
    %64 = vst.msk [vmem:[#allocation0] sm:$0x1] %vm63, %v62
    %s65 = scalar_lea.vmem %s0, 5
    %v66 = vld [vmem:[%s65] sm:$0x1]
    %67 = vrot.lane.b32.xlu0 %v66, 40
    %v68 = vpop.permute.xlu0 %67
    %vm69 = vcmask 392512
    %70 = vst.msk [vmem:[#allocation0] sm:$0x1] %vm69, %v68
    %s71 = scalar_lea.vmem %s0, 4
    %v72 = vld [vmem:[%s71] sm:$0x1]
    %73 = vrot.lane.b32.xlu0 %v72, 32
    %v74 = vpop.permute.xlu0 %73
    %vm75 = vcmask 326912
    %76 = vst.msk [vmem:[#allocation0] sm:$0x1] %vm75, %v74
    %s77 = scalar_lea.vmem %s0, 3
    %v78 = vld [vmem:[%s77] sm:$0x1]
    %79 = vrot.lane.b32.xlu0 %v78, 24
    %v80 = vpop.permute.xlu0 %79
    %vm81 = vcmask 261312
    %82 = vst.msk [vmem:[#allocation0] sm:$0x1] %vm81, %v80
    %s83 = scalar_lea.vmem %s0, 2
    %v84 = vld [vmem:[%s83] sm:$0x1]
    %85 = vrot.lane.b32.xlu0 %v84, 16
    %v86 = vpop.permute.xlu0 %85
    %vm87 = vcmask 195712
    %88 = vst.msk [vmem:[#allocation0] sm:$0x1] %vm87, %v86
    %s89 = scalar_lea.vmem %s0, 1
    %v90 = vld [vmem:[%s89] sm:$0x1]
    %91 = vrot.lane.b32.xlu0 %v90, 8
    %v92 = vpop.permute.xlu0 %91
    %vm93 = vcmask 130112
    %94 = vst.msk [vmem:[#allocation0] sm:$0x1] %vm93, %v92
    %s96 = sshll.u32 1, 1
    %s97 = ssub.s32 %s96, 1
    %v99 = vld [vmem:[#allocation0] sm:%s97]
    %s100 = sshll.u32 1, 1
    %s101 = ssub.s32 %s100, 1
    %102 = vst [vmem:[%s1] sm:%s101] %v99

// kernel: basic_block_pallas.1
$region0: #{basic_block_pallas.1}
  #allocation0 [shape = 'u32[]', space=smem, size = 0x4, offset = 0x4, fixed_abs, tag = 'smem constant byte address 0x4 - core index']
  #allocation1 [shape = 'u32[144,128]{1,0:T(1,128)}', space=vmem, size = 0x12000, scoped, tag = 'internal scratch']
  %s0 = inlined_call_operand.vmem [shape: bf16[2,16,64], index: 0, kind: input, shape index: {}]
  %s1 = inlined_call_operand.vmem [shape: bf16[3,64,256], index: 1, kind: input, shape index: {}]
  %s2 = inlined_call_operand.vmem [shape: bf16[384,128], index: 2, kind: input, shape index: {}]
  %s3 = inlined_call_operand.vmem [shape: f32[1,128], index: 3, kind: input, shape index: {}]
  %s4 = inlined_call_operand.vmem [shape: f32[1,128], index: 4, kind: input, shape index: {}]
  %s5 = inlined_call_operand.vmem [shape: f32[2,16,128], index: 5, kind: output, shape index: {}]
  %s6 = sld [smem:[#allocation0]]
  $region30: #{basic_block_pallas.1} parent=0
    _
  %s8 = ssub.s32 1, %s6
  %s9 = scalar_select 0, %s8, %s6
  // Predicated region
  $region2: #{basic_block_pallas.1} parent=0 // pred_check
    _
  $region3: #{basic_block_pallas.1} parent=0 // pred_check_branch
    %11 = sbr.rel (0) target = $region5
  $region4: #{basic_block_pallas.1} parent=0 // pred_region
    _
  $region5: #{basic_block_pallas.1} parent=0 // pred_fallthru
    _
  // Predicated region
  $region6: #{basic_block_pallas.1} parent=0 // pred_check
    _
  $region7: #{basic_block_pallas.1} parent=0 // pred_check_branch
    %13 = sbr.rel (0) target = $region9
  $region8: #{basic_block_pallas.1} parent=0 // pred_region
    _
  $region9: #{basic_block_pallas.1} parent=0 // pred_fallthru
    _
  // Predicated region
  $region10: #{basic_block_pallas.1} parent=0 // pred_check
    _
  $region11: #{basic_block_pallas.1} parent=0 // pred_check_branch
    %15 = sbr.rel (0) target = $region13
  $region12: #{basic_block_pallas.1} parent=0 // pred_region
    _
  $region13: #{basic_block_pallas.1} parent=0 // pred_fallthru
    _
  // Predicated region
  $region14: #{basic_block_pallas.1} parent=0 // pred_check
    _
  $region15: #{basic_block_pallas.1} parent=0 // pred_check_branch
    %17 = sbr.rel (0) target = $region17
  $region16: #{basic_block_pallas.1} parent=0 // pred_region
    _
  $region17: #{basic_block_pallas.1} parent=0 // pred_fallthru
    _
  // Predicated region
  $region18: #{basic_block_pallas.1} parent=0 // pred_check
    _
  $region19: #{basic_block_pallas.1} parent=0 // pred_check_branch
    %19 = sbr.rel (0) target = $region21
  $region20: #{basic_block_pallas.1} parent=0 // pred_region
    _
  $region21: #{basic_block_pallas.1} parent=0 // pred_fallthru
    _
  %v21 = vld [vmem:[%s0] sm:$0xf]
  %v22 = vld [vmem:[%s0 + $0x4] sm:$0xf]
  %v23 = vld [vmem:[%s0 + $0x8] sm:$0xf]
  %v24 = vld [vmem:[%s0 + $0xc] sm:$0xf]
  %v29 = vunpack.c.l.b16 %v21
  %v30 = vunpack.c.l.b16 %v22
  %v31 = vunpack.c.l.b16 %v23
  %v32 = vunpack.c.l.b16 %v24
  %v33 = vpack.c.b16 %v30, %v29
  %v34 = vpack.c.b16 %v32, %v31
  %v36 = vshrl.u32 %v33, 16
  %v38 = vrot.slane %v36, 7
  %v39 = vshll.u32 %v33, 16
  %v41 = vor.u32 %v38, %v39
  %v43 = vshrl.u32 %v34, 16
  %v45 = vrot.slane %v43, 7
  %v46 = vshll.u32 %v34, 16
  %v48 = vor.u32 %v45, %v46
  %vm51 = vcmask 1040384
  %vm52 = vsmask.f32 256
  %vm53 = vmand %vm51, %vm52
  %v54 = vsel %vm53, 0, %v41
  %v55 = vsel %vm53, 0, %v48
  %v56 = vrot.slane %v39, 1
  %v57 = vor.u32 %v36, %v56
  %v58 = vrot.slane %v46, 1
  %v59 = vor.u32 %v43, %v58
  %vm62 = vcmask 1047552
  %vm63 = vsmask.f32 7424
  %vm64 = vmand %vm62, %vm63
  %v65 = vsel %vm64, %v57, 0
  %v66 = vsel %vm64, %v59, 0
  %v67 = vld [vmem:[%s1] sm:$0xff]
  %v68 = vld [vmem:[%s1 + $0x8] sm:$0xff]
  %v69 = vld [vmem:[%s1 + $0x10] sm:$0xff]
  %v70 = vld [vmem:[%s1 + $0x18] sm:$0xff]
  %v71 = vld [vmem:[%s1 + $0x20] sm:$0xff]
  %v72 = vld [vmem:[%s1 + $0x28] sm:$0xff]
  %v73 = vld [vmem:[%s1 + $0x30] sm:$0xff]
  %v74 = vld [vmem:[%s1 + $0x38] sm:$0xff]
  %s75 = scalar_lea.vmem %s1, 64
  %v76 = vld [vmem:[%s75] sm:$0xff]
  %v77 = vld [vmem:[%s75 + $0x8] sm:$0xff]
  %v78 = vld [vmem:[%s75 + $0x10] sm:$0xff]
  %v79 = vld [vmem:[%s75 + $0x18] sm:$0xff]
  %v80 = vld [vmem:[%s75 + $0x20] sm:$0xff]
  %v81 = vld [vmem:[%s75 + $0x28] sm:$0xff]
  %v82 = vld [vmem:[%s75 + $0x30] sm:$0xff]
  %v83 = vld [vmem:[%s75 + $0x38] sm:$0xff]
  %v92 = vunpack.c.l.b16 %v76
  %v93 = vunpack.c.h.b16 %v76
  %v94 = vunpack.c.l.b16 %v77
  %v95 = vunpack.c.h.b16 %v77
  %v96 = vunpack.c.l.b16 %v78
  %v97 = vunpack.c.h.b16 %v78
  %v98 = vunpack.c.l.b16 %v79
  %v99 = vunpack.c.h.b16 %v79
  %v100 = vunpack.c.l.b16 %v80
  %v101 = vunpack.c.h.b16 %v80
  %v102 = vunpack.c.l.b16 %v81
  %v103 = vunpack.c.h.b16 %v81
  %v104 = vunpack.c.l.b16 %v82
  %v105 = vunpack.c.h.b16 %v82
  %v106 = vunpack.c.l.b16 %v83
  %v107 = vunpack.c.h.b16 %v83
  %v108 = vpack.c.b16 %v94, %v92
  %v109 = vpack.c.b16 %v95, %v93
  %v110 = vpack.c.b16 %v98, %v96
  %v111 = vpack.c.b16 %v99, %v97
  %v112 = vpack.c.b16 %v102, %v100
  %v113 = vpack.c.b16 %v103, %v101
  %v114 = vpack.c.b16 %v106, %v104
  %v115 = vpack.c.b16 %v107, %v105
  %vm124 = vcmask 523264
  %v125 = vsel %vm124, %v33, 0
  %v127 = vsel %vm124, %v34, 0
  %129 = vmatprep.subr.bf16.mxu0 0
  %130 = vmatpush1.bf16.msra.mxu0 0
  %131 = vmatprep.subr.bf16.mxu0 0
  %132 = vmatpush1.bf16.msra.mxu0 0
  %133 = vmatprep.subr.bf16.mxu0 0
  %134 = vmatpush1.bf16.msra.mxu0 0
  %135 = vmatprep.subr.bf16.mxu0 0
  %136 = vmatpush1.bf16.msra.mxu0 0
  %137 = vmatprep.subr.bf16.mxu0 %v115
  %138 = vmatpush1.bf16.msra.mxu0 %v114
  %139 = vmatprep.subr.bf16.mxu0 %v113
  %140 = vmatpush1.bf16.msra.mxu0 %v112
  %141 = vmatprep.subr.bf16.mxu0 %v111
  %142 = vmatpush1.bf16.msra.mxu0 %v110
  %143 = vmatprep.subr.bf16.mxu0 %v109
  %144 = vmatpush1.bf16.msra.mxu0 %v108
  %145 = vmatprep.subr.bf16.mxu0 0
  %146 = vmatpush2.bf16.msra.mxu0 0
  %147 = vmatprep.subr.bf16.mxu0 0
  %148 = vmatpush2.bf16.msra.mxu0 0
  %149 = vmatprep.subr.bf16.mxu0 0
  %150 = vmatpush2.bf16.msra.mxu0 0
  %151 = vmatprep.subr.bf16.mxu0 0
  %152 = vmatpush2.bf16.msra.mxu0 0
  %153 = vmatprep.subr.bf16.mxu0 0
  %154 = vmatpush2.bf16.msra.mxu0 0
  %155 = vmatprep.subr.bf16.mxu0 0
  %156 = vmatpush2.bf16.msra.mxu0 0
  %157 = vmatprep.subr.bf16.mxu0 0
  %158 = vmatpush2.bf16.msra.mxu0 0
  %159 = vmatprep.subr.bf16.mxu0 0
  %160 = vmatpush2.bf16.msra.mxu0 0
  %161 = vmatprep.mubr.bf16.mxu0 0
  %162 = vmatmul.mubr.bf16.gmra.mxu0 %v125
  %v163 = vpop.f32.mrf.mxu0
  %v164 = vadd.f32 0.0, %v163
  %v165 = vpop.f32.mrf.mxu0
  %v166 = vadd.f32 0.0, %v165
  %v167 = vpop.f32.mrf.mxu0
  %v168 = vadd.f32 0.0, %v167
  %v169 = vpop.f32.mrf.mxu0
  %v170 = vadd.f32 0.0, %v169
  %171 = vmatprep.mubr.bf16.mxu0 0
  %172 = vmatmul.mubr.bf16.gmra.mxu0 %v127
  %v173 = vpop.f32.mrf.mxu0
  %v174 = vadd.f32 0.0, %v173
  %v175 = vpop.f32.mrf.mxu0
  %v176 = vadd.f32 0.0, %v175
  %v177 = vpop.f32.mrf.mxu0
  %v178 = vadd.f32 0.0, %v177
  %v179 = vpop.f32.mrf.mxu0
  %v180 = vadd.f32 0.0, %v179
  %181 = vdwg.mxu0
  %v190 = vunpack.c.l.b16 %v67
  %v191 = vunpack.c.h.b16 %v67
  %v192 = vunpack.c.l.b16 %v68
  %v193 = vunpack.c.h.b16 %v68
  %v194 = vunpack.c.l.b16 %v69
  %v195 = vunpack.c.h.b16 %v69
  %v196 = vunpack.c.l.b16 %v70
  %v197 = vunpack.c.h.b16 %v70
  %v198 = vunpack.c.l.b16 %v71
  %v199 = vunpack.c.h.b16 %v71
  %v200 = vunpack.c.l.b16 %v72
  %v201 = vunpack.c.h.b16 %v72
  %v202 = vunpack.c.l.b16 %v73
  %v203 = vunpack.c.h.b16 %v73
  %v204 = vunpack.c.l.b16 %v74
  %v205 = vunpack.c.h.b16 %v74
  %v206 = vpack.c.b16 %v192, %v190
  %v207 = vpack.c.b16 %v193, %v191
  %v208 = vpack.c.b16 %v196, %v194
  %v209 = vpack.c.b16 %v197, %v195
  %v210 = vpack.c.b16 %v200, %v198
  %v211 = vpack.c.b16 %v201, %v199
  %v212 = vpack.c.b16 %v204, %v202
  %v213 = vpack.c.b16 %v205, %v203
  %v223 = vsel %vm124, %v54, 0
  %v226 = vsel %vm124, %v55, 0
  %228 = vmatprep.subr.bf16.mxu0 0
  %229 = vmatpush1.bf16.msra.mxu0 0
  %230 = vmatprep.subr.bf16.mxu0 0
  %231 = vmatpush1.bf16.msra.mxu0 0
  %232 = vmatprep.subr.bf16.mxu0 0
  %233 = vmatpush1.bf16.msra.mxu0 0
  %234 = vmatprep.subr.bf16.mxu0 0
  %235 = vmatpush1.bf16.msra.mxu0 0
  %236 = vmatprep.subr.bf16.mxu0 %v213
  %237 = vmatpush1.bf16.msra.mxu0 %v212
  %238 = vmatprep.subr.bf16.mxu0 %v211
  %239 = vmatpush1.bf16.msra.mxu0 %v210
  %240 = vmatprep.subr.bf16.mxu0 %v209
  %241 = vmatpush1.bf16.msra.mxu0 %v208
  %242 = vmatprep.subr.bf16.mxu0 %v207
  %243 = vmatpush1.bf16.msra.mxu0 %v206
  %244 = vmatprep.subr.bf16.mxu0 0
  %245 = vmatpush2.bf16.msra.mxu0 0
  %246 = vmatprep.subr.bf16.mxu0 0
  %247 = vmatpush2.bf16.msra.mxu0 0
  %248 = vmatprep.subr.bf16.mxu0 0
  %249 = vmatpush2.bf16.msra.mxu0 0
  %250 = vmatprep.subr.bf16.mxu0 0
  %251 = vmatpush2.bf16.msra.mxu0 0
  %252 = vmatprep.subr.bf16.mxu0 0
  %253 = vmatpush2.bf16.msra.mxu0 0
  %254 = vmatprep.subr.bf16.mxu0 0
  %255 = vmatpush2.bf16.msra.mxu0 0
  %256 = vmatprep.subr.bf16.mxu0 0
  %257 = vmatpush2.bf16.msra.mxu0 0
  %258 = vmatprep.subr.bf16.mxu0 0
  %259 = vmatpush2.bf16.msra.mxu0 0
  %260 = vmatprep.mubr.bf16.mxu0 0
  %261 = vmatmul.mubr.bf16.gmra.mxu0 %v223
  %v262 = vpop.f32.mrf.mxu0
  %v263 = vadd.f32 %v164, %v262
  %v264 = vpop.f32.mrf.mxu0
  %v265 = vadd.f32 %v166, %v264
  %v266 = vpop.f32.mrf.mxu0
  %v267 = vadd.f32 %v168, %v266
  %v268 = vpop.f32.mrf.mxu0
  %v269 = vadd.f32 %v170, %v268
  %270 = vmatprep.mubr.bf16.mxu0 0
  %271 = vmatmul.mubr.bf16.gmra.mxu0 %v226
  %v272 = vpop.f32.mrf.mxu0
  %v273 = vadd.f32 %v174, %v272
  %v274 = vpop.f32.mrf.mxu0
  %v275 = vadd.f32 %v176, %v274
  %v276 = vpop.f32.mrf.mxu0
  %v277 = vadd.f32 %v178, %v276
  %v278 = vpop.f32.mrf.mxu0
  %v279 = vadd.f32 %v180, %v278
  %280 = vdwg.mxu0
  %s281 = scalar_lea.vmem %s1, 128
  %v282 = vld [vmem:[%s281] sm:$0xff]
  %v283 = vld [vmem:[%s281 + $0x8] sm:$0xff]
  %v284 = vld [vmem:[%s281 + $0x10] sm:$0xff]
  %v285 = vld [vmem:[%s281 + $0x18] sm:$0xff]
  %v286 = vld [vmem:[%s281 + $0x20] sm:$0xff]
  %v287 = vld [vmem:[%s281 + $0x28] sm:$0xff]
  %v288 = vld [vmem:[%s281 + $0x30] sm:$0xff]
  %v289 = vld [vmem:[%s281 + $0x38] sm:$0xff]
  %v298 = vunpack.c.l.b16 %v282
  %v299 = vunpack.c.h.b16 %v282
  %v300 = vunpack.c.l.b16 %v283
  %v301 = vunpack.c.h.b16 %v283
  %v302 = vunpack.c.l.b16 %v284
  %v303 = vunpack.c.h.b16 %v284
  %v304 = vunpack.c.l.b16 %v285
  %v305 = vunpack.c.h.b16 %v285
  %v306 = vunpack.c.l.b16 %v286
  %v307 = vunpack.c.h.b16 %v286
  %v308 = vunpack.c.l.b16 %v287
  %v309 = vunpack.c.h.b16 %v287
  %v310 = vunpack.c.l.b16 %v288
  %v311 = vunpack.c.h.b16 %v288
  %v312 = vunpack.c.l.b16 %v289
  %v313 = vunpack.c.h.b16 %v289
  %v314 = vpack.c.b16 %v300, %v298
  %v315 = vpack.c.b16 %v301, %v299
  %v316 = vpack.c.b16 %v304, %v302
  %v317 = vpack.c.b16 %v305, %v303
  %v318 = vpack.c.b16 %v308, %v306
  %v319 = vpack.c.b16 %v309, %v307
  %v320 = vpack.c.b16 %v312, %v310
  %v321 = vpack.c.b16 %v313, %v311
  %v331 = vsel %vm124, %v65, 0
  %v334 = vsel %vm124, %v66, 0
  %336 = vmatprep.subr.bf16.mxu0 0
  %337 = vmatpush1.bf16.msra.mxu0 0
  %338 = vmatprep.subr.bf16.mxu0 0
  %339 = vmatpush1.bf16.msra.mxu0 0
  %340 = vmatprep.subr.bf16.mxu0 0
  %341 = vmatpush1.bf16.msra.mxu0 0
  %342 = vmatprep.subr.bf16.mxu0 0
  %343 = vmatpush1.bf16.msra.mxu0 0
  %344 = vmatprep.subr.bf16.mxu0 %v321
  %345 = vmatpush1.bf16.msra.mxu0 %v320
  %346 = vmatprep.subr.bf16.mxu0 %v319
  %347 = vmatpush1.bf16.msra.mxu0 %v318
  %348 = vmatprep.subr.bf16.mxu0 %v317
  %349 = vmatpush1.bf16.msra.mxu0 %v316
  %350 = vmatprep.subr.bf16.mxu0 %v315
  %351 = vmatpush1.bf16.msra.mxu0 %v314
  %352 = vmatprep.subr.bf16.mxu0 0
  %353 = vmatpush2.bf16.msra.mxu0 0
  %354 = vmatprep.subr.bf16.mxu0 0
  %355 = vmatpush2.bf16.msra.mxu0 0
  %356 = vmatprep.subr.bf16.mxu0 0
  %357 = vmatpush2.bf16.msra.mxu0 0
  %358 = vmatprep.subr.bf16.mxu0 0
  %359 = vmatpush2.bf16.msra.mxu0 0
  %360 = vmatprep.subr.bf16.mxu0 0
  %361 = vmatpush2.bf16.msra.mxu0 0
  %362 = vmatprep.subr.bf16.mxu0 0
  %363 = vmatpush2.bf16.msra.mxu0 0
  %364 = vmatprep.subr.bf16.mxu0 0
  %365 = vmatpush2.bf16.msra.mxu0 0
  %366 = vmatprep.subr.bf16.mxu0 0
  %367 = vmatpush2.bf16.msra.mxu0 0
  %368 = vmatprep.mubr.bf16.mxu0 0
  %369 = vmatmul.mubr.bf16.gmra.mxu0 %v331
  %v370 = vpop.f32.mrf.mxu0
  %v371 = vadd.f32 0.0, %v370
  %v372 = vpop.f32.mrf.mxu0
  %v373 = vadd.f32 0.0, %v372
  %v374 = vpop.f32.mrf.mxu0
  %v375 = vadd.f32 0.0, %v374
  %v376 = vpop.f32.mrf.mxu0
  %v377 = vadd.f32 0.0, %v376
  %378 = vmatprep.mubr.bf16.mxu0 0
  %379 = vmatmul.mubr.bf16.gmra.mxu0 %v334
  %v380 = vpop.f32.mrf.mxu0
  %v381 = vadd.f32 0.0, %v380
  %v382 = vpop.f32.mrf.mxu0
  %v383 = vadd.f32 0.0, %v382
  %v384 = vpop.f32.mrf.mxu0
  %v385 = vadd.f32 0.0, %v384
  %v386 = vpop.f32.mrf.mxu0
  %v387 = vadd.f32 0.0, %v386
  %388 = vdwg.mxu0
  %v389 = vadd.f32 %v263, %v371
  %v390 = vadd.f32 %v265, %v373
  %v391 = vadd.f32 %v267, %v375
  %v392 = vadd.f32 %v269, %v377
  %v393 = vadd.f32 %v273, %v381
  %v394 = vadd.f32 %v275, %v383
  %v395 = vadd.f32 %v277, %v385
  %v396 = vadd.f32 %v279, %v387
  %v397 = vld [vmem:[%s3] sm:$0x1]
  %v399 = vlaneseq
  %v400 = vshrl.u32 %v399, 7
  %v401 = vsub.s32 0, %v400
  %v402 = vrot.slane %v397, %v401
  %v404 = vadd.f32 %v389, %v402
  %v405 = vadd.f32 %v391, %v402
  %v406 = vadd.f32 %v393, %v402
  %v407 = vadd.f32 %v395, %v402
  %v408 = vmax.f32 %v404, 0.0
  %v409 = vmax.f32 %v405, 0.0
  %v410 = vmax.f32 %v406, 0.0
  %v411 = vmax.f32 %v407, 0.0
  %v412 = vpack.c.bf16 %v409, %v408
  %v413 = vpack.c.bf16 %v411, %v410
  %v415 = vshrl.u32 %v412, 16
  %v417 = vrot.slane %v415, 7
  %v418 = vshll.u32 %v412, 16
  %v420 = vor.u32 %v417, %v418
  %v422 = vshrl.u32 %v413, 16
  %v424 = vrot.slane %v422, 7
  %v425 = vshll.u32 %v413, 16
  %v427 = vor.u32 %v424, %v425
  %v430 = vsel %vm53, 0, %v420
  %v431 = vsel %vm53, 0, %v427
  %v432 = vrot.slane %v418, 1
  %v433 = vor.u32 %v415, %v432
  %v434 = vrot.slane %v425, 1
  %v435 = vor.u32 %v422, %v434
  %v438 = vsel %vm64, %v433, 0
  %v439 = vsel %vm64, %v435, 0
  %v440 = vld [vmem:[%s2] sm:$0xf]
  %v441 = vld [vmem:[%s2 + $0x4] sm:$0xf]
  %v442 = vld [vmem:[%s2 + $0x8] sm:$0xf]
  %v443 = vld [vmem:[%s2 + $0xc] sm:$0xf]
  %v444 = vld [vmem:[%s2 + $0x10] sm:$0xf]
  %v445 = vld [vmem:[%s2 + $0x14] sm:$0xf]
  %v446 = vld [vmem:[%s2 + $0x18] sm:$0xf]
  %v447 = vld [vmem:[%s2 + $0x1c] sm:$0xf]
  %v448 = vld [vmem:[%s2 + $0x20] sm:$0xf]
  %v449 = vld [vmem:[%s2 + $0x24] sm:$0xf]
  %v450 = vld [vmem:[%s2 + $0x28] sm:$0xf]
  %v451 = vld [vmem:[%s2 + $0x2c] sm:$0xf]
  %v452 = vld [vmem:[%s2 + $0x30] sm:$0xf]
  %v453 = vld [vmem:[%s2 + $0x34] sm:$0xf]
  %v454 = vld [vmem:[%s2 + $0x38] sm:$0xf]
  %v455 = vld [vmem:[%s2 + $0x3c] sm:$0xf]
  %v456 = vld [vmem:[%s2 + $0x40] sm:$0xf]
  %v457 = vld [vmem:[%s2 + $0x44] sm:$0xf]
  %v458 = vld [vmem:[%s2 + $0x48] sm:$0xf]
  %v459 = vld [vmem:[%s2 + $0x4c] sm:$0xf]
  %v460 = vld [vmem:[%s2 + $0x50] sm:$0xf]
  %v461 = vld [vmem:[%s2 + $0x54] sm:$0xf]
  %v462 = vld [vmem:[%s2 + $0x58] sm:$0xf]
  %v463 = vld [vmem:[%s2 + $0x5c] sm:$0xf]
  %v464 = vld [vmem:[%s2 + $0x60] sm:$0xf]
  %v465 = vld [vmem:[%s2 + $0x64] sm:$0xf]
  %v466 = vld [vmem:[%s2 + $0x68] sm:$0xf]
  %v467 = vld [vmem:[%s2 + $0x6c] sm:$0xf]
  %v468 = vld [vmem:[%s2 + $0x70] sm:$0xf]
  %v469 = vld [vmem:[%s2 + $0x74] sm:$0xf]
  %v470 = vld [vmem:[%s2 + $0x78] sm:$0xf]
  %v471 = vld [vmem:[%s2 + $0x7c] sm:$0xf]
  %v472 = vld [vmem:[%s2 + $0x80] sm:$0xf]
  %v473 = vld [vmem:[%s2 + $0x84] sm:$0xf]
  %v474 = vld [vmem:[%s2 + $0x88] sm:$0xf]
  %v475 = vld [vmem:[%s2 + $0x8c] sm:$0xf]
  %v476 = vld [vmem:[%s2 + $0x90] sm:$0xf]
  %v477 = vld [vmem:[%s2 + $0x94] sm:$0xf]
  %v478 = vld [vmem:[%s2 + $0x98] sm:$0xf]
  %v479 = vld [vmem:[%s2 + $0x9c] sm:$0xf]
  %v480 = vld [vmem:[%s2 + $0xa0] sm:$0xf]
  %v481 = vld [vmem:[%s2 + $0xa4] sm:$0xf]
  %v482 = vld [vmem:[%s2 + $0xa8] sm:$0xf]
  %v483 = vld [vmem:[%s2 + $0xac] sm:$0xf]
  %v484 = vld [vmem:[%s2 + $0xb0] sm:$0xf]
  %v485 = vld [vmem:[%s2 + $0xb4] sm:$0xf]
  %v486 = vld [vmem:[%s2 + $0xb8] sm:$0xf]
  %v487 = vld [vmem:[%s2 + $0xbc] sm:$0xf]
  %v536 = vunpack.c.l.b16 %v440
  %v537 = vunpack.c.l.b16 %v441
  %v538 = vunpack.c.l.b16 %v442
  %v539 = vunpack.c.l.b16 %v443
  %v540 = vunpack.c.l.b16 %v444
  %v541 = vunpack.c.l.b16 %v445
  %v542 = vunpack.c.l.b16 %v446
  %v543 = vunpack.c.l.b16 %v447
  %v544 = vunpack.c.l.b16 %v448
  %v545 = vunpack.c.l.b16 %v449
  %v546 = vunpack.c.l.b16 %v450
  %v547 = vunpack.c.l.b16 %v451
  %v548 = vunpack.c.l.b16 %v452
  %v549 = vunpack.c.l.b16 %v453
  %v550 = vunpack.c.l.b16 %v454
  %v551 = vunpack.c.l.b16 %v455
  %v552 = vunpack.c.l.b16 %v456
  %v553 = vunpack.c.l.b16 %v457
  %v554 = vunpack.c.l.b16 %v458
  %v555 = vunpack.c.l.b16 %v459
  %v556 = vunpack.c.l.b16 %v460
  %v557 = vunpack.c.l.b16 %v461
  %v558 = vunpack.c.l.b16 %v462
  %v559 = vunpack.c.l.b16 %v463
  %v560 = vunpack.c.l.b16 %v464
  %v561 = vunpack.c.l.b16 %v465
  %v562 = vunpack.c.l.b16 %v466
  %v563 = vunpack.c.l.b16 %v467
  %v564 = vunpack.c.l.b16 %v468
  %v565 = vunpack.c.l.b16 %v469
  %v566 = vunpack.c.l.b16 %v470
  %v567 = vunpack.c.l.b16 %v471
  %v568 = vunpack.c.l.b16 %v472
  %v569 = vunpack.c.l.b16 %v473
  %v570 = vunpack.c.l.b16 %v474
  %v571 = vunpack.c.l.b16 %v475
  %v572 = vunpack.c.l.b16 %v476
  %v573 = vunpack.c.l.b16 %v477
  %v574 = vunpack.c.l.b16 %v478
  %v575 = vunpack.c.l.b16 %v479
  %v576 = vunpack.c.l.b16 %v480
  %v577 = vunpack.c.l.b16 %v481
  %v578 = vunpack.c.l.b16 %v482
  %v579 = vunpack.c.l.b16 %v483
  %v580 = vunpack.c.l.b16 %v484
  %v581 = vunpack.c.l.b16 %v485
  %v582 = vunpack.c.l.b16 %v486
  %v583 = vunpack.c.l.b16 %v487
  %v584 = vpack.c.b16 %v537, %v536
  %v585 = vpack.c.b16 %v539, %v538
  %v586 = vpack.c.b16 %v541, %v540
  %v587 = vpack.c.b16 %v543, %v542
  %v588 = vpack.c.b16 %v545, %v544
  %v589 = vpack.c.b16 %v547, %v546
  %v590 = vpack.c.b16 %v549, %v548
  %v591 = vpack.c.b16 %v551, %v550
  %v592 = vpack.c.b16 %v553, %v552
  %v593 = vpack.c.b16 %v555, %v554
  %v594 = vpack.c.b16 %v557, %v556
  %v595 = vpack.c.b16 %v559, %v558
  %v596 = vpack.c.b16 %v561, %v560
  %v597 = vpack.c.b16 %v563, %v562
  %v598 = vpack.c.b16 %v565, %v564
  %v599 = vpack.c.b16 %v567, %v566
  %v600 = vpack.c.b16 %v569, %v568
  %v601 = vpack.c.b16 %v571, %v570
  %v602 = vpack.c.b16 %v573, %v572
  %v603 = vpack.c.b16 %v575, %v574
  %v604 = vpack.c.b16 %v577, %v576
  %v605 = vpack.c.b16 %v579, %v578
  %v606 = vpack.c.b16 %v581, %v580
  %v607 = vpack.c.b16 %v583, %v582
  %632 = vmatprep.subr.bf16.mxu0 0
  %633 = vmatpush1.bf16.msra.mxu0 %v591
  %634 = vmatprep.subr.bf16.mxu0 0
  %635 = vmatpush1.bf16.msra.mxu0 %v590
  %636 = vmatprep.subr.bf16.mxu0 0
  %637 = vmatpush1.bf16.msra.mxu0 %v589
  %638 = vmatprep.subr.bf16.mxu0 0
  %639 = vmatpush1.bf16.msra.mxu0 %v588
  %640 = vmatprep.subr.bf16.mxu0 0
  %641 = vmatpush1.bf16.msra.mxu0 %v587
  %642 = vmatprep.subr.bf16.mxu0 0
  %643 = vmatpush1.bf16.msra.mxu0 %v586
  %644 = vmatprep.subr.bf16.mxu0 0
  %645 = vmatpush1.bf16.msra.mxu0 %v585
  %646 = vmatprep.subr.bf16.mxu0 0
  %647 = vmatpush1.bf16.msra.mxu0 %v584
  %648 = vmatprep.subr.bf16.mxu0 0
  %649 = vmatpush2.bf16.msra.mxu0 %v599
  %650 = vmatprep.subr.bf16.mxu0 0
  %651 = vmatpush2.bf16.msra.mxu0 %v598
  %652 = vmatprep.subr.bf16.mxu0 0
  %653 = vmatpush2.bf16.msra.mxu0 %v597
  %654 = vmatprep.subr.bf16.mxu0 0
  %655 = vmatpush2.bf16.msra.mxu0 %v596
  %656 = vmatprep.subr.bf16.mxu0 0
  %657 = vmatpush2.bf16.msra.mxu0 %v595
  %658 = vmatprep.subr.bf16.mxu0 0
  %659 = vmatpush2.bf16.msra.mxu0 %v594
  %660 = vmatprep.subr.bf16.mxu0 0
  %661 = vmatpush2.bf16.msra.mxu0 %v593
  %662 = vmatprep.subr.bf16.mxu0 0
  %663 = vmatpush2.bf16.msra.mxu0 %v592
  %664 = vmatprep.mubr.bf16.mxu0 %v412
  %665 = vmatmul.mubr.bf16.gmra.mxu0 %v430
  %v666 = vpop.f32.mrf.mxu0
  %v667 = vadd.f32 %v390, %v666
  %v668 = vpop.f32.mrf.mxu0
  %v669 = vpop.f32.mrf.mxu0
  %v670 = vadd.f32 %v392, %v669
  %v671 = vpop.f32.mrf.mxu0
  %672 = vmatprep.mubr.bf16.mxu0 %v413
  %673 = vmatmul.mubr.bf16.gmra.mxu0 %v431
  %v674 = vpop.f32.mrf.mxu0
  %v675 = vadd.f32 %v394, %v674
  %v676 = vpop.f32.mrf.mxu0
  %v677 = vpop.f32.mrf.mxu0
  %v678 = vadd.f32 %v396, %v677
  %v679 = vpop.f32.mrf.mxu0
  %680 = vdwg.mxu0
  %681 = vmatprep.subr.bf16.mxu0 0
  %682 = vmatpush1.bf16.msra.mxu0 %v607
  %683 = vmatprep.subr.bf16.mxu0 0
  %684 = vmatpush1.bf16.msra.mxu0 %v606
  %685 = vmatprep.subr.bf16.mxu0 0
  %686 = vmatpush1.bf16.msra.mxu0 %v605
  %687 = vmatprep.subr.bf16.mxu0 0
  %688 = vmatpush1.bf16.msra.mxu0 %v604
  %689 = vmatprep.subr.bf16.mxu0 0
  %690 = vmatpush1.bf16.msra.mxu0 %v603
  %691 = vmatprep.subr.bf16.mxu0 0
  %692 = vmatpush1.bf16.msra.mxu0 %v602
  %693 = vmatprep.subr.bf16.mxu0 0
  %694 = vmatpush1.bf16.msra.mxu0 %v601
  %695 = vmatprep.subr.bf16.mxu0 0
  %696 = vmatpush1.bf16.msra.mxu0 %v600
  %697 = vmatprep.subr.bf16.mxu0 0
  %698 = vmatpush2.bf16.msra.mxu0 0
  %699 = vmatprep.subr.bf16.mxu0 0
  %700 = vmatpush2.bf16.msra.mxu0 0
  %701 = vmatprep.subr.bf16.mxu0 0
  %702 = vmatpush2.bf16.msra.mxu0 0
  %703 = vmatprep.subr.bf16.mxu0 0
  %704 = vmatpush2.bf16.msra.mxu0 0
  %705 = vmatprep.subr.bf16.mxu0 0
  %706 = vmatpush2.bf16.msra.mxu0 0
  %707 = vmatprep.subr.bf16.mxu0 0
  %708 = vmatpush2.bf16.msra.mxu0 0
  %709 = vmatprep.subr.bf16.mxu0 0
  %710 = vmatpush2.bf16.msra.mxu0 0
  %711 = vmatprep.subr.bf16.mxu0 0
  %712 = vmatpush2.bf16.msra.mxu0 0
  %713 = vmatprep.mubr.bf16.mxu0 0
  %714 = vmatmul.mubr.bf16.gmra.mxu0 %v438
  %v715 = vpop.f32.mrf.mxu0
  %v716 = vadd.f32 %v667, %v715
  %v717 = vpop.f32.mrf.mxu0
  %v718 = vpop.f32.mrf.mxu0
  %v719 = vadd.f32 %v670, %v718
  %v720 = vpop.f32.mrf.mxu0
  %721 = vmatprep.mubr.bf16.mxu0 0
  %722 = vmatmul.mubr.bf16.gmra.mxu0 %v439
  %v723 = vpop.f32.mrf.mxu0
  %v724 = vadd.f32 %v675, %v723
  %v725 = vpop.f32.mrf.mxu0
  %v726 = vpop.f32.mrf.mxu0
  %v727 = vadd.f32 %v678, %v726
  %v728 = vpop.f32.mrf.mxu0
  %729 = vdwg.mxu0
  %v730 = vld [vmem:[%s4] sm:$0x1]
  %v732 = vlaneseq
  %v733 = vshrl.u32 %v732, 7
  %v734 = vsub.s32 0, %v733
  %v735 = vrot.slane %v730, %v734
  %v737 = vadd.f32 %v716, %v735
  %v738 = vadd.f32 %v719, %v735
  %v739 = vadd.f32 %v724, %v735
  %v740 = vadd.f32 %v727, %v735
  %v741 = vmax.f32 %v737, 0.0
  %v742 = vmax.f32 %v738, 0.0
  %v743 = vmax.f32 %v739, 0.0
  %v744 = vmax.f32 %v740, 0.0
  %745 = vst [vmem:[%s5] sm:$0xff] %v741
  %746 = vst [vmem:[%s5 + $0x8] sm:$0xff] %v742
  %747 = vst [vmem:[%s5 + $0x10] sm:$0xff] %v743
  %748 = vst [vmem:[%s5 + $0x18] sm:$0xff] %v744
  // Predicated region
  $region22: #{basic_block_pallas.1} parent=0 // pred_check
    _
  $region23: #{basic_block_pallas.1} parent=0 // pred_check_branch
    %750 = sbr.rel (0) target = $region25
  $region24: #{basic_block_pallas.1} parent=0 // pred_region
    _
  $region25: #{basic_block_pallas.1} parent=0 // pred_fallthru
    _
  // Predicated region
  $region26: #{basic_block_pallas.1} parent=0 // pred_check
    _
  $region27: #{basic_block_pallas.1} parent=0 // pred_check_branch
    %752 = sbr.rel (0) target = $region29
  $region28: #{basic_block_pallas.1} parent=0 // pred_region
    _
  $region29: #{basic_block_pallas.1} parent=0 // pred_fallthru
    _

</llo_original>
